<compile_context>
chip_gen: v7x
topology: tpu7x:2x2x1
jax: 0.10.0
libtpu: 0.0.40
codegen_flags: <defaults>
</compile_context>

<pallas_src>
import math

import jax
import jax.numpy as jnp
from jax.experimental import pallas as pl
from jax.experimental.pallas import tpu as pltpu


def _vector_scaling_kernel(x_ref, wb_ref, o_ref):
    # x_ref: (tb, LW) input dtype; wb_ref: (2, LW) f32 with row 0 = W, row 1 = b.
    # Single fused multiply-add in f32, one full-width store per vreg.
    x = x_ref[...].astype(jnp.float32)
    o_ref[...] = (x * wb_ref[0:1, :] + wb_ref[1:2, :]).astype(o_ref.dtype)


def _cdiv(a, b):
    return -(-a // b)


_SINGLE_TC_MARKERS = ("v5e", "v5 lite", "v5lite", "v6e", "v6 lite", "v6lite")


def _tensorcores_per_device():
    """1 for single-TensorCore chips (v5e/v6e); 2 otherwise (v7x / megacore)."""
    try:
        kind = jax.devices()[0].device_kind.lower()
    except Exception:
        return 1
    if any(m in kind for m in _SINGLE_TC_MARKERS):
        return 1
    return 2


def _choose_layout(B, L, elem_bytes, max_block_bytes, sublanes):
    """Pick a lane-dense presentation of the [B, L] problem.

    Returns (mode, rows, lw):
      "native": last axis is already a multiple of 128 (no repack).
      "repack": flat reshape to [rows, lw] with lw = lcm(L, 128); W/b tiled.
      "pad":    lane axis zero-padded to the next multiple of 128; the wrapper
                slices the pad back off (keeps stores unmasked).
    """
    if L % 128 == 0:
        return "native", B, L
    lw = math.lcm(L, 128)
    # Repack only when the flat buffer tiles evenly AND one minimal
    # (sublanes x lw) block still fits the per-block budget — for L coprime
    # with 128 the lcm is 128*L and would otherwise blow the VMEM budget.
    if (B * L) % lw == 0 and sublanes * lw * elem_bytes <= max_block_bytes:
        return "repack", (B * L) // lw, lw
    return "pad", B, _cdiv(L, 128) * 128


def vector_scaling(logits, W, b, *,
                   max_block_bytes=6 * 1024 * 1024,
                   min_pallas_bytes=256 * 1024,
                   force_pallas=False):
    """VectorScaling forward: logits * W + b.  logits: [B, L]; W, b: [L]."""
    B, L = logits.shape
    in_dtype = logits.dtype
    # Parameters stay f32; the output dtype follows JAX / PyTorch promotion.
    out_dtype = jnp.result_type(logits.dtype, W.dtype, b.dtype)
    elem_bytes = jnp.dtype(in_dtype).itemsize
    out_elem_bytes = jnp.dtype(out_dtype).itemsize
    total_bytes = B * L * elem_bytes

    # Tiny problems: let XLA fuse the elementwise op; pallas_call + pipeline
    # setup cost dwarfs the work below this size.
    if not force_pallas and total_bytes < min_pallas_bytes:
        return (logits * W + b).astype(out_dtype)

    # Packed-sublane row count for the input dtype (8 f32 / 16 bf16 / 32 int8).
    sublanes = max(8, 32 // elem_bytes)

    mode, rows, lw = _choose_layout(B, L, elem_bytes, max_block_bytes, sublanes)

    w32 = W.astype(jnp.float32)
    b32 = b.astype(jnp.float32)
    if mode == "native":
        x2 = logits
        wb = jnp.stack([w32, b32], axis=0)
    elif mode == "repack":
        reps = lw // L
        x2 = logits.reshape(rows, lw)
        wb = jnp.stack([jnp.tile(w32, reps), jnp.tile(b32, reps)], axis=0)
    else:  # "pad": lane-dense via zero padding; padded lanes sliced off below.
        pad = lw - L
        x2 = jnp.pad(logits, ((0, 0), (0, pad)))
        wb = jnp.stack([jnp.pad(w32, (0, pad)), jnp.pad(b32, (0, pad))], axis=0)

    # ---- Row tiling: big VMEM-budgeted blocks, balanced even grid. ----
    if rows <= sublanes:
        tb = rows                                    # single full-extent block
    else:
        per_block_rows = max(
            sublanes,
            (max_block_bytes // (lw * max(elem_bytes, out_elem_bytes)))
            // sublanes * sublanes)
        n_blocks = _cdiv(rows, per_block_rows)
        cores = _tensorcores_per_device()
        if cores > 1:
            # Multi-TC chip (v7x): feed both TensorCores with an even, balanced
            # split of the "parallel" axis.  Single-TC chips skip this (a grid
            # there is a serial loop, so splitting is pure per-step overhead).
            if n_blocks == 1 and rows >= cores * sublanes:
                n_blocks = cores
            if n_blocks > 1 and n_blocks % cores:
                n_blocks += cores - (n_blocks % cores)
        tb = min(rows, _cdiv(_cdiv(rows, n_blocks), sublanes) * sublanes)
    grid = (_cdiv(rows, tb),)

    # Explicit scoped-VMEM budget: (x block + out block) double-buffered + the
    # tiny [2, lw] parameter block + slack.  v5e's scoped default is only
    # 16 MiB, so blocks above ~2 MiB need this; cap below v7x's 64 MiB per TC.
    vmem_needed = 2 * tb * lw * (elem_bytes + out_elem_bytes) + 4 * lw * 4 + (2 << 20)
    vmem_limit = int(min(max(vmem_needed, 24 << 20), 60 << 20))

    cost = pl.CostEstimate(
        flops=2 * rows * lw,
        transcendentals=0,
        bytes_accessed=rows * lw * (elem_bytes + out_elem_bytes) + 2 * lw * 4,
    )

    out = pl.pallas_call(
        _vector_scaling_kernel,
        out_shape=jax.ShapeDtypeStruct((rows, lw), out_dtype),
        grid_spec=pltpu.PrefetchScalarGridSpec(
            num_scalar_prefetch=0,
            grid=grid,
            in_specs=[
                pl.BlockSpec((tb, lw), lambda i: (i, 0)),
                pl.BlockSpec((2, lw), lambda i: (0, 0)),   # params: VMEM-resident
            ],
            out_specs=pl.BlockSpec((tb, lw), lambda i: (i, 0)),
        ),
        compiler_params=pltpu.CompilerParams(
            dimension_semantics=("parallel",),
            vmem_limit_bytes=vmem_limit,
        ),
        cost_estimate=cost,
    )(x2, wb)

    if mode == "repack":
        return out.reshape(B, L)
    if mode == "pad":
        return out[:, :L]
    return out


if __name__ == "__main__":
    key = jax.random.PRNGKey(0)
    k1, k2, k3, k4, k5 = jax.random.split(key, 5)

    # ---- Test 1: small demo matching the module (B=8, logits_len=32). ----
    B, L = 8, 32
    logits = jax.random.normal(k1, (B, L), dtype=jnp.float32)
    # Deterministic init matching VectorScaling.__init__:
    W = jnp.ones((L,), dtype=jnp.float32) * 1.0
    b = jnp.zeros((L,), dtype=jnp.float32) + 0.1

    out = jax.block_until_ready(vector_scaling(logits, W, b, force_pallas=True))
    ref = logits * W + b
    assert out.shape == (B, L) and out.dtype == jnp.float32
    assert jnp.allclose(out, ref, atol=1e-6, rtol=1e-6)

    # ---- Test 2: lane-dense repack with several rows. ----
    B2, L2 = 64, 32
    logits2 = jax.random.normal(k2, (B2, L2), dtype=jnp.float32)
    W2 = jnp.ones((L2,), dtype=jnp.float32)
    b2 = jnp.zeros((L2,), dtype=jnp.float32) + 0.1
    out2 = jax.block_until_ready(vector_scaling(logits2, W2, b2, force_pallas=True))
    assert jnp.allclose(out2, logits2 * W2 + b2, atol=1e-6, rtol=1e-6)

    # ---- Test 3: awkward shape -> lane padded to 128, pad sliced off. ----
    B3, L3 = 5, 48
    logits3 = jax.random.normal(k3, (B3, L3), dtype=jnp.float32)
    W3 = jnp.ones((L3,), dtype=jnp.float32)
    b3 = jnp.zeros((L3,), dtype=jnp.float32) + 0.1
    out3 = jax.block_until_ready(vector_scaling(logits3, W3, b3, force_pallas=True))
    assert out3.shape == (B3, L3)
    assert jnp.allclose(out3, logits3 * W3 + b3, atol=1e-6, rtol=1e-6)

    # ---- Test 4: bf16 logits, f32 params -> FMA in f32, f32 output. ----
    B4, L4 = 16, 256
    logits4 = jax.random.normal(k4, (B4, L4), dtype=jnp.bfloat16)
    W4 = jnp.ones((L4,), dtype=jnp.float32)
    b4 = jnp.zeros((L4,), dtype=jnp.float32) + 0.1
    out4 = jax.block_until_ready(vector_scaling(logits4, W4, b4, force_pallas=True))
    assert out4.dtype == jnp.float32
    assert jnp.allclose(out4, logits4.astype(jnp.float32) * W4 + b4,
                        atol=1e-6, rtol=1e-6)

    # ---- Test 5: native 128-multiple lane axis, multi-row tiling path. ----
    B5, L5 = 512, 128
    logits5 = jax.random.normal(k5, (B5, L5), dtype=jnp.float32)
    W5 = jnp.ones((L5,), dtype=jnp.float32)
    b5 = jnp.zeros((L5,), dtype=jnp.float32) + 0.1
    out5 = jax.block_until_ready(vector_scaling(logits5, W5, b5, force_pallas=True))
    assert jnp.allclose(out5, logits5 * W5 + b5, atol=1e-6, rtol=1e-6)

    print("KERNEL_OK")
</pallas_src>

<mosaic_0001>
module attributes {stable_mosaic.version = 11 : i64} {
  func.func @_vector_scaling_kernel(%arg0: i32, %arg1: memref<2x128xf32, #tpu.memory_space<vmem>>, %arg2: memref<2x128xf32, #tpu.memory_space<vmem>>, %arg3: memref<2x128xf32, #tpu.memory_space<vmem>>) attributes {dimension_semantics = [#tpu.dimension_semantics<parallel>], iteration_bounds = array<i64: 1>, scalar_prefetch = 0 : i64, scratch_operands = 0 : i64, tpu.core_type = #tpu.core_type<tc>, window_params = [{transform_indices = @transform_0, window_bounds = array<i64: 2, 128>}, {pipeline_mode = #tpu.pipeline_mode<synchronous>, transform_indices = @transform_1, window_bounds = array<i64: 2, 128>}, {transform_indices = @transform_2, window_bounds = array<i64: 2, 128>}]} {
    %c0 = arith.constant 0 : index
    %c0_0 = arith.constant 0 : index
    %0 = vector.load %arg1[%c0, %c0_0] : memref<2x128xf32, #tpu.memory_space<vmem>>, vector<2x128xf32>
    %c0_1 = arith.constant 0 : index
    %c0_2 = arith.constant 0 : index
    %1 = vector.load %arg2[%c0_1, %c0_2] : memref<2x128xf32, #tpu.memory_space<vmem>>, vector<1x128xf32>
    %2 = vector.broadcast %1 : vector<1x128xf32> to vector<2x128xf32>
    %3 = arith.mulf %0, %2 : vector<2x128xf32>
    %c1 = arith.constant 1 : index
    %c0_3 = arith.constant 0 : index
    %4 = vector.load %arg2[%c1, %c0_3] : memref<2x128xf32, #tpu.memory_space<vmem>>, vector<1x128xf32>
    %5 = vector.broadcast %4 : vector<1x128xf32> to vector<2x128xf32>
    %6 = arith.addf %3, %5 : vector<2x128xf32>
    %c0_4 = arith.constant 0 : index
    %c0_5 = arith.constant 0 : index
    %7 = vector.load %arg3[%c0_4, %c0_5] : memref<2x128xf32, #tpu.memory_space<vmem>>, vector<2x128xf32>
    tpu.vector_store %arg3[%c0_4, %c0_5], %6 {strides = array<i32>} : memref<2x128xf32, #tpu.memory_space<vmem>>, vector<2x128xf32>,
    return
  }
  func.func @transform_0(%arg0: i32) -> (i32, i32) {
    %c0_i32 = arith.constant 0 : i32
    %c0_i32_0 = arith.constant 0 : i32
    return %arg0, %c0_i32 : i32, i32
  }
  func.func @transform_1(%arg0: i32) -> (i32, i32) {
    %c0_i32 = arith.constant 0 : i32
    %c0_i32_0 = arith.constant 0 : i32
    %c0_i32_1 = arith.constant 0 : i32
    return %c0_i32, %c0_i32_0 : i32, i32
  }
  func.func @transform_2(%arg0: i32) -> (i32, i32) {
    %c0_i32 = arith.constant 0 : i32
    %c0_i32_0 = arith.constant 0 : i32
    return %arg0, %c0_i32 : i32, i32
  }
}

</mosaic_0001>

<llo_original>
// kernel: tpu_custom_call.1
$region0: #{tpu_custom_call.1}
  #allocation0 [shape = 'u32[]', space=smem, size = 0x4, offset = 0x4, fixed_abs, tag = 'smem constant byte address 0x4 - core index']
  #allocation1 [shape = 'u32[144,128]{1,0:T(1,128)}', space=vmem, size = 0x12000, scoped, tag = 'internal scratch']
  %s0 = inlined_call_operand.hbm [shape: f32[2,128], index: 0, kind: input, shape index: {}]
  %s1 = inlined_call_operand.vmem [shape: f32[2,128], index: 1, kind: input, shape index: {}]
  %s2 = inlined_call_operand.hbm [shape: f32[2,128], index: 2, kind: output, shape index: {}]
  %s3 = sld [smem:[#allocation0]]
  $region22: #{tpu_custom_call.1} parent=0
    _
  %s5 = ssub.s32 1, %s3
  %s6 = scalar_select 0, %s5, %s3
  $region1: #{tpu_custom_call.1} parent=0
    #allocation2 [shape = 'u8[1024]{0}', space=vmem, size = 0x400, scoped, tag = 'input window, operand 0, single buffered']
    #allocation3 [shape = 's32[1]{0}', space=sflag, size = 0x4, scoped, tag = 'scoped memory for tpu_custom_call.1']
    #allocation4 [shape = 's32[1]{0}', space=sflag, size = 0x4, scoped, tag = 'scoped memory for tpu_custom_call.1']
    #allocation5 [shape = 'u8[1024]{0}', space=vmem, size = 0x400, scoped, tag = 'output window, operand 0, single buffered']
    %7 = vsyncpa [#allocation3], 0
    %8 = vsyncpa [#allocation4], 0
    // Predicated region
    $region2: #{tpu_custom_call.1} parent=1 // pred_check
      _
    $region3: #{tpu_custom_call.1} parent=1 // pred_check_branch
      %10 = sbr.rel (0) target = $region5
    $region4: #{tpu_custom_call.1} parent=1 // pred_region
      %s12 = ssub.s32 32, 32
      %13 = vsyncadd [#allocation3], %s12
      %s15 = sshll.u32 [#allocation2], 4
      %s16 = int_to_ptr.vmem [resolvable:$true] %s15
      %18 = dma.hbm_to_vmem [thread:$0]  %s0, 32, %s16, [#allocation3]
    $region5: #{tpu_custom_call.1} parent=1 // pred_fallthru
      _
    // Predicated region
    $region6: #{tpu_custom_call.1} parent=1 // pred_check
      _
    $region7: #{tpu_custom_call.1} parent=1 // pred_check_branch
      %20 = sbr.rel (0) target = $region9
    $region8: #{tpu_custom_call.1} parent=1 // pred_region
      _
    $region9: #{tpu_custom_call.1} parent=1 // pred_fallthru
      _
    // Predicated region
    $region10: #{tpu_custom_call.1} parent=1 // pred_check
      _
    $region11: #{tpu_custom_call.1} parent=1 // pred_check_branch
      %22 = sbr.rel (0) target = $region13
    $region12: #{tpu_custom_call.1} parent=1 // pred_region
      %23 = dma.done [#allocation3], 32
    $region13: #{tpu_custom_call.1} parent=1 // pred_fallthru
      _
    %v24 = vld [vmem:[#allocation2] sm:$0x3]
    %v25 = vld [vmem:[%s1] sm:$0x1]
    %v26 = vlaneseq
    %v27 = vshrl.u32 %v26, 7
    %v28 = vsub.s32 0, %v27
    %v29 = vrot.slane %v25, %v28
    %v30 = vmul.f32 %v24, %v29
    %v31 = vld [vmem:[%s1 + $0x1] sm:$0x1]
    %v32 = vlaneseq
    %v33 = vshrl.u32 %v32, 7
    %v34 = vsub.s32 0, %v33
    %v35 = vrot.slane %v31, %v34
    %v36 = vadd.f32 %v30, %v35
    %37 = vst [vmem:[#allocation5] sm:$0x3] %v36
    // Predicated region
    $region14: #{tpu_custom_call.1} parent=1 // pred_check
      _
    $region15: #{tpu_custom_call.1} parent=1 // pred_check_branch
      %39 = sbr.rel (0) target = $region17
    $region16: #{tpu_custom_call.1} parent=1 // pred_region
      %s41 = ssub.s32 32, 32
      %42 = vsyncadd [#allocation4], %s41
      %s44 = sshll.u32 [#allocation5], 4
      %s45 = int_to_ptr.vmem [resolvable:$true] %s44
      %47 = dma.vmem_to_hbm [thread:$0]  %s45, 32, %s2, [#allocation4]
    $region17: #{tpu_custom_call.1} parent=1 // pred_fallthru
      _
    // Predicated region
    $region18: #{tpu_custom_call.1} parent=1 // pred_check
      _
    $region19: #{tpu_custom_call.1} parent=1 // pred_check_branch
      %49 = sbr.rel (0) target = $region21
    $region20: #{tpu_custom_call.1} parent=1 // pred_region
      %50 = dma.done [#allocation4], 32
    $region21: #{tpu_custom_call.1} parent=1 // pred_fallthru
      _
    %51 = vsyncpa [#allocation3], 1
    %52 = vsyncpa [#allocation4], 1

</llo_original>
